<compile_context>
chip_gen: v7x
topology: tpu7x:2x2x1
jax: 0.10.0
libtpu: 0.0.40
codegen_flags: <defaults>
</compile_context>

<pallas_src>
import jax
import jax.numpy as jnp
import numpy as np
from jax.experimental import pallas as pl
from jax.experimental.pallas import tpu as pltpu

# ----- small synthetic hyper-parameters (consistent with the module) -----
B = 2          # batch
T = 16         # sequence length (wav2vec frames)
E = 32         # embedding_dim == wav2vec.config.hidden_size
H = 32         # hidden_dim_emo
OUT_DIM = 8    # output_dim (emotion classes)
SPK_DIM = 10   # speaker classes (hard-coded 10 in the module)
K = 5          # conv kernel_size (padding=2 -> 'same')
L = 3          # number of wav2vec hidden-state layers that get summed

PAD = (K - 1) // 2
BLK = 2 * H                 # per-batch lane block: [emo branch | spk branch]
PACK = B * BLK              # total activation lanes (= 128 at these sizes)
EMO_OFF = 0                 # within each per-batch head block: out_emo cols
SPK_OFF = 16                # within each per-batch head block: out_spkr cols
assert EMO_OFF + OUT_DIM <= SPK_OFF and SPK_OFF + SPK_DIM <= BLK


def wav2vec_head_kernel(hs_ref, w1_ref, b1_ref, w2_ref, b2_ref, wh_ref, bh_ref,
                        h2_ref, hid_ref, head_ref):
    # Fused `embedded = sum(hidden_all)` plus batch->lane packing:
    # xw[:, b*E:(b+1)*E] = sum_l hs[l, b]    -> (T, B*E)
    xs = jnp.sum(hs_ref[...], axis=0)                              # (B, T, E) f32
    xw = jnp.concatenate([xs[b] for b in range(B)], axis=-1)       # (T, B*E)

    def im2col(a):
        # (T, C) -> (T, K*C): 'same' zero-padded taps, tap-major on lanes.
        # Done on register values; no VMEM round trip.
        z = jnp.zeros((PAD, a.shape[-1]), a.dtype)
        ap = jnp.concatenate([z, a, z], axis=0)                    # (T+K-1, C)
        return jnp.concatenate([ap[k:k + T, :] for k in range(K)], axis=-1)

    # ---- layer 1: conv1 (emotion) || conv3 (speaker), both batches, 1 matmul
    cols1 = im2col(xw).astype(jnp.bfloat16)                        # (T, K*B*E)
    h1 = jnp.dot(cols1, w1_ref[...], preferred_element_type=jnp.float32)
    h1 = jnp.maximum(h1 + b1_ref[...], 0.0)                        # (T, B*2H)

    # ---- layer 2: conv2 / conv4 via one block-diagonal matmul ----
    cols2 = im2col(h1).astype(jnp.bfloat16)                        # (T, K*B*2H)
    h2 = jnp.dot(cols2, w2_ref[...], preferred_element_type=jnp.float32)
    h2 = jnp.maximum(h2 + b2_ref[...], 0.0)                        # (T, B*2H)

    # Lane-dense activation slab (emo_embedded + speaker branch, both batches).
    h2_ref[...] = h2

    # Time mean-pool, exact f32 -> (1, B*2H) = [emo_hid_b | spk_hid_b]_b.
    hid = jnp.mean(h2, axis=0, keepdims=True)
    hid_ref[...] = hid

    # Fused linear heads: out_emo / out_spkr for both batches in one bf16
    # matmul (no f32 multi-pass decomposition on v5e).
    head_ref[...] = (jnp.dot(hid.astype(jnp.bfloat16), wh_ref[...],
                             preferred_element_type=jnp.float32) + bh_ref[...])


def _full_spec(shape):
    nd = len(shape)
    return pl.BlockSpec(shape, lambda i, nd=nd: (0,) * nd)


def _block_diag(a, b):
    za = jnp.zeros((a.shape[0], b.shape[1]), a.dtype)
    zb = jnp.zeros((b.shape[0], a.shape[1]), b.dtype)
    return jnp.concatenate(
        [jnp.concatenate([a, za], axis=1),
         jnp.concatenate([zb, b], axis=1)], axis=0)


def wav2vec_head_forward(hidden_states, params, alpha):
    # `alpha` only affects the backward pass (gradient reversal); forward is
    # identity, so it is accepted and ignored here.
    del alpha
    (w1, b1, w2, b2, w3, b3, w4, b4, wo, bo, ws, bs) = params
    eye_b = jnp.eye(B, dtype=jnp.float32)

    # ---- host-side weight packing (layout plumbing, not compute) ----
    # layer 1: conv1 || conv3 along Cout, block-diagonal over batch lanes.
    # im2col row order is (tap k, batch b, cin e).
    w_cat = jnp.concatenate([w1, w3], axis=-1)                         # (K, E, 2H)
    w_l1 = jnp.concatenate(
        [jnp.kron(eye_b, w_cat[k]) for k in range(K)], axis=0
    ).astype(jnp.bfloat16)                                             # (K*B*E, B*2H)
    b_l1 = jnp.tile(jnp.concatenate([b1, b3], axis=-1), (1, B))        # (1, B*2H)
    # layer 2: block-diagonal over (batch, branch): conv2 on the emotion half,
    # conv4 on the speaker half.
    w_l2 = jnp.concatenate(
        [jnp.kron(eye_b, _block_diag(w2[k], w4[k])) for k in range(K)], axis=0
    ).astype(jnp.bfloat16)                                             # (K*B*2H, B*2H)
    b_l2 = jnp.tile(jnp.concatenate([b2, b4], axis=-1), (1, B))        # (1, B*2H)
    # fused heads: per-batch 64-wide column block holds out_emo and out_spkr.
    # emo_hidden is read directly from the pooled row (no identity passthrough).
    wh = jnp.zeros((B * 2 * H, PACK), jnp.float32)
    bh = jnp.zeros((1, PACK), jnp.float32)
    for b in range(B):
        c0 = b * BLK
        wh = wh.at[c0:c0 + H, c0 + EMO_OFF:c0 + EMO_OFF + OUT_DIM].set(wo)
        wh = wh.at[c0 + H:c0 + 2 * H, c0 + SPK_OFF:c0 + SPK_OFF + SPK_DIM].set(ws)
        bh = bh.at[:, c0 + EMO_OFF:c0 + EMO_OFF + OUT_DIM].set(bo)
        bh = bh.at[:, c0 + SPK_OFF:c0 + SPK_OFF + SPK_DIM].set(bs)
    wh = wh.astype(jnp.bfloat16)

    operands = (hidden_states, w_l1, b_l1, w_l2, b_l2, wh, bh)
    out_shapes = (
        jax.ShapeDtypeStruct((T, PACK), jnp.float32),   # h2 slab (emo|spk, both b)
        jax.ShapeDtypeStruct((1, PACK), jnp.float32),   # time-pooled hidden row
        jax.ShapeDtypeStruct((1, PACK), jnp.float32),   # packed head outputs
    )

    flops = (2 * T * (K * B * E) * (B * 2 * H)
             + 2 * T * (K * B * 2 * H) * (B * 2 * H)
             + 2 * (B * 2 * H) * PACK)
    bytes_accessed = (L * B * T * E * 4
                      + (w_l1.size + w_l2.size + wh.size) * 2
                      + (b_l1.size + b_l2.size + bh.size) * 4
                      + (T * PACK + 2 * PACK) * 4)

    # TODO(synk): for real wav2vec dims (E=768/1024, T in the hundreds) this
    # single-step grid must become a time-tiled grid (tq multiple of 8, with a
    # (K-1)-row halo) marked "parallel" and an explicit vmem_limit_bytes, so it
    # fits v7x's 64 MiB VMEM and uses both of its TensorCores.
    h2p, hidp, headp = pl.pallas_call(
        wav2vec_head_kernel,
        out_shape=out_shapes,
        grid=(1,),
        in_specs=[_full_spec(op.shape) for op in operands],
        out_specs=[_full_spec(s.shape) for s in out_shapes],
        compiler_params=pltpu.CompilerParams(
            dimension_semantics=("arbitrary",)),
        cost_estimate=pl.CostEstimate(flops=flops, transcendentals=0,
                                      bytes_accessed=bytes_accessed),
    )(*operands)

    # Wrapper-side slicing of the lane-dense packed outputs (layout plumbing).
    emo_embedded = jnp.stack(
        [h2p[:, b * BLK:b * BLK + H] for b in range(B)], axis=0)        # (B, T, H)
    emo_hidden = jnp.stack(
        [hidp[0, b * BLK:b * BLK + H] for b in range(B)], axis=0)       # (B, H)
    out_emo = jnp.stack(
        [headp[0, b * BLK + EMO_OFF:b * BLK + EMO_OFF + OUT_DIM]
         for b in range(B)], axis=0)                                    # (B, OUT_DIM)
    out_spkr = jnp.stack(
        [headp[0, b * BLK + SPK_OFF:b * BLK + SPK_OFF + SPK_DIM]
         for b in range(B)], axis=0)                                    # (B, SPK_DIM)
    return out_emo, out_spkr, emo_hidden, emo_embedded


# --------------------- pure-JAX reference (for checking) ---------------------
def _conv1d_same_ref(x, w, b):
    # x: (B, T, Cin), w: (K, Cin, Cout), b: (1, Cout)
    pad = (K - 1) // 2
    xp = jnp.pad(x, ((0, 0), (pad, pad), (0, 0)))
    y = jnp.broadcast_to(b[None], (x.shape[0], T, w.shape[2]))
    for k in range(K):
        y = y + jnp.einsum('bte,eh->bth', xp[:, k:k + T], w[k])
    return y


def reference_forward(embedded, params, alpha):
    del alpha
    (w1, b1, w2, b2, w3, b3, w4, b4, wo, bo, ws, bs) = params
    h1 = jax.nn.relu(_conv1d_same_ref(embedded, w1, b1))
    emo_embedded = jax.nn.relu(_conv1d_same_ref(h1, w2, b2))      # (B, T, H)
    emo_hidden = jnp.mean(emo_embedded, axis=1)                   # (B, H)
    out_emo = emo_hidden @ wo + bo
    s1 = jax.nn.relu(_conv1d_same_ref(embedded, w3, b3))
    spk = jax.nn.relu(_conv1d_same_ref(s1, w4, b4))
    hidden_spkr = jnp.mean(spk, axis=1)
    output_spkr = hidden_spkr @ ws + bs
    return out_emo, output_spkr, emo_hidden, emo_embedded


# ------------------------------------ main ------------------------------------
if __name__ == "__main__":
    key = jax.random.PRNGKey(0)
    ks = jax.random.split(key, 16)

    def rnd(k, shape, scale=0.1):
        return jax.random.normal(k, shape, dtype=jnp.float32) * scale

    # Deterministic synthetic parameters (conv weights already in kernel
    # layout (K, Cin, Cout) == PyTorch (Cout, Cin, K) transposed (2, 1, 0);
    # linear weights stored transposed as (in, out)).
    params = (
        rnd(ks[0], (K, E, H)), rnd(ks[1], (1, H)),        # conv1
        rnd(ks[2], (K, H, H)), rnd(ks[3], (1, H)),        # conv2
        rnd(ks[4], (K, E, H)), rnd(ks[5], (1, H)),        # conv3
        rnd(ks[6], (K, H, H)), rnd(ks[7], (1, H)),        # conv4
        rnd(ks[8], (H, OUT_DIM)), rnd(ks[9], (1, OUT_DIM)),    # self.out
        rnd(ks[10], (H, SPK_DIM)), rnd(ks[11], (1, SPK_DIM)),  # self.out_spkr
    )

    # TODO(synk): the pretrained wav2vec transformer backbone is an external
    # nn.Module; here its per-layer hidden states are synthesized.  Their sum
    # (`embedded = sum(hidden_all)`) is now fused inside the Pallas kernel.
    hidden_states = jax.random.normal(ks[12], (L, B, T, E), dtype=jnp.float32)
    alpha = 0.5  # gradient-reversal strength; unused in forward

    outs = wav2vec_head_forward(hidden_states, params, alpha)
    outs = jax.block_until_ready(outs)

    embedded = jnp.sum(hidden_states, axis=0)                     # (B, T, E)
    refs = reference_forward(embedded, params, alpha)
    # Tolerance accounts for bf16 MXU inputs (f32 accumulation/bias/ReLU/mean);
    # the f32 reference is otherwise exact-equivalent.
    for o, r in zip(outs, refs):
        np.testing.assert_allclose(np.asarray(o), np.asarray(r),
                                   rtol=2e-2, atol=5e-2)

    print("KERNEL_OK")
</pallas_src>

<mosaic_0001>
module attributes {stable_mosaic.version = 11 : i64} {
  func.func @wav2vec_head_kernel(%arg0: i32, %arg1: memref<3x2x16x32xf32, #tpu.memory_space<vmem>>, %arg2: memref<320x128xbf16, #tpu.memory_space<vmem>>, %arg3: memref<1x128xf32, #tpu.memory_space<vmem>>, %arg4: memref<640x128xbf16, #tpu.memory_space<vmem>>, %arg5: memref<1x128xf32, #tpu.memory_space<vmem>>, %arg6: memref<128x128xbf16, #tpu.memory_space<vmem>>, %arg7: memref<1x128xf32, #tpu.memory_space<vmem>>, %arg8: memref<16x128xf32, #tpu.memory_space<vmem>>, %arg9: memref<1x128xf32, #tpu.memory_space<vmem>>, %arg10: memref<1x128xf32, #tpu.memory_space<vmem>>) attributes {dimension_semantics = [#tpu.dimension_semantics<arbitrary>], iteration_bounds = array<i64: 1>, scalar_prefetch = 0 : i64, scratch_operands = 0 : i64, tpu.core_type = #tpu.core_type<tc>, window_params = [{pipeline_mode = #tpu.pipeline_mode<synchronous>, transform_indices = @transform_0, window_bounds = array<i64: 3, 2, 16, 32>}, {pipeline_mode = #tpu.pipeline_mode<synchronous>, transform_indices = @transform_1, window_bounds = array<i64: 320, 128>}, {pipeline_mode = #tpu.pipeline_mode<synchronous>, transform_indices = @transform_2, window_bounds = array<i64: 1, 128>}, {pipeline_mode = #tpu.pipeline_mode<synchronous>, transform_indices = @transform_3, window_bounds = array<i64: 640, 128>}, {pipeline_mode = #tpu.pipeline_mode<synchronous>, transform_indices = @transform_4, window_bounds = array<i64: 1, 128>}, {pipeline_mode = #tpu.pipeline_mode<synchronous>, transform_indices = @transform_5, window_bounds = array<i64: 128, 128>}, {pipeline_mode = #tpu.pipeline_mode<synchronous>, transform_indices = @transform_6, window_bounds = array<i64: 1, 128>}, {pipeline_mode = #tpu.pipeline_mode<synchronous>, transform_indices = @transform_7, window_bounds = array<i64: 16, 128>}, {pipeline_mode = #tpu.pipeline_mode<synchronous>, transform_indices = @transform_8, window_bounds = array<i64: 1, 128>}, {pipeline_mode = #tpu.pipeline_mode<synchronous>, transform_indices = @transform_9, window_bounds = array<i64: 1, 128>}]} {
    %c0 = arith.constant 0 : index
    %c0_0 = arith.constant 0 : index
    %c0_1 = arith.constant 0 : index
    %c0_2 = arith.constant 0 : index
    %0 = vector.load %arg1[%c0, %c0_0, %c0_1, %c0_2] : memref<3x2x16x32xf32, #tpu.memory_space<vmem>>, vector<3x2x16x32xf32>
    %cst = arith.constant dense<0.000000e+00> : vector<2x16x32xf32>
    %1 = vector.multi_reduction <add>, %0, %cst [0] : vector<3x2x16x32xf32> to vector<2x16x32xf32>
    %2 = vector.extract_strided_slice %1 {offsets = [0, 0, 0], sizes = [1, 16, 32], strides = [1, 1, 1]} : vector<2x16x32xf32> to vector<1x16x32xf32>
    %3 = vector.shape_cast %2 : vector<1x16x32xf32> to vector<16x32xf32>
    %4 = vector.extract_strided_slice %1 {offsets = [1, 0, 0], sizes = [1, 16, 32], strides = [1, 1, 1]} : vector<2x16x32xf32> to vector<1x16x32xf32>
    %5 = vector.shape_cast %4 : vector<1x16x32xf32> to vector<16x32xf32>
    %6 = tpu.concatenate %3, %5 in 1 : vector<16x32xf32>, vector<16x32xf32> -> vector<16x64xf32>
    %cst_3 = arith.constant 0.000000e+00 : f32
    %7 = vector.broadcast %cst_3 : f32 to vector<2x64xf32>
    %8 = tpu.concatenate %7, %6, %7 in 0 : vector<2x64xf32>, vector<16x64xf32>, vector<2x64xf32> -> vector<20x64xf32>
    %9 = vector.extract_strided_slice %8 {offsets = [0, 0], sizes = [16, 64], strides = [1, 1]} : vector<20x64xf32> to vector<16x64xf32>
    %10 = vector.extract_strided_slice %8 {offsets = [1, 0], sizes = [16, 64], strides = [1, 1]} : vector<20x64xf32> to vector<16x64xf32>
    %11 = vector.extract_strided_slice %8 {offsets = [2, 0], sizes = [16, 64], strides = [1, 1]} : vector<20x64xf32> to vector<16x64xf32>
    %12 = vector.extract_strided_slice %8 {offsets = [3, 0], sizes = [16, 64], strides = [1, 1]} : vector<20x64xf32> to vector<16x64xf32>
    %13 = vector.extract_strided_slice %8 {offsets = [4, 0], sizes = [16, 64], strides = [1, 1]} : vector<20x64xf32> to vector<16x64xf32>
    %14 = tpu.concatenate %9, %10, %11, %12, %13 in 1 : vector<16x64xf32>, vector<16x64xf32>, vector<16x64xf32>, vector<16x64xf32>, vector<16x64xf32> -> vector<16x320xf32>
    %15 = arith.truncf %14 : vector<16x320xf32> to vector<16x320xbf16>
    %c0_4 = arith.constant 0 : index
    %c0_5 = arith.constant 0 : index
    %16 = vector.load %arg2[%c0_4, %c0_5] : memref<320x128xbf16, #tpu.memory_space<vmem>>, vector<320x128xbf16>
    %cst_6 = arith.constant dense<0.000000e+00> : vector<16x128xf32>
    %17 = tpu.matmul %15, %16, %cst_6 {dimension_numbers = #tpu.dot_dimension_numbers<[1], [0], [0], [1], [0, 0, 1, 1], [], []>} : vector<16x320xbf16>, vector<320x128xbf16>, vector<16x128xf32> -> vector<16x128xf32>
    %c0_7 = arith.constant 0 : index
    %c0_8 = arith.constant 0 : index
    %18 = vector.load %arg3[%c0_7, %c0_8] : memref<1x128xf32, #tpu.memory_space<vmem>>, vector<1x128xf32>
    %19 = vector.broadcast %18 : vector<1x128xf32> to vector<16x128xf32>
    %20 = arith.addf %17, %19 : vector<16x128xf32>
    %cst_9 = arith.constant 0.000000e+00 : f32
    %21 = vector.broadcast %cst_9 : f32 to vector<16x128xf32>
    %22 = arith.maximumf %20, %21 : vector<16x128xf32>
    %cst_10 = arith.constant 0.000000e+00 : f32
    %23 = vector.broadcast %cst_10 : f32 to vector<2x128xf32>
    %24 = tpu.concatenate %23, %22, %23 in 0 : vector<2x128xf32>, vector<16x128xf32>, vector<2x128xf32> -> vector<20x128xf32>
    %25 = vector.extract_strided_slice %24 {offsets = [0, 0], sizes = [16, 128], strides = [1, 1]} : vector<20x128xf32> to vector<16x128xf32>
    %26 = vector.extract_strided_slice %24 {offsets = [1, 0], sizes = [16, 128], strides = [1, 1]} : vector<20x128xf32> to vector<16x128xf32>
    %27 = vector.extract_strided_slice %24 {offsets = [2, 0], sizes = [16, 128], strides = [1, 1]} : vector<20x128xf32> to vector<16x128xf32>
    %28 = vector.extract_strided_slice %24 {offsets = [3, 0], sizes = [16, 128], strides = [1, 1]} : vector<20x128xf32> to vector<16x128xf32>
    %29 = vector.extract_strided_slice %24 {offsets = [4, 0], sizes = [16, 128], strides = [1, 1]} : vector<20x128xf32> to vector<16x128xf32>
    %30 = tpu.concatenate %25, %26, %27, %28, %29 in 1 : vector<16x128xf32>, vector<16x128xf32>, vector<16x128xf32>, vector<16x128xf32>, vector<16x128xf32> -> vector<16x640xf32>
    %31 = arith.truncf %30 : vector<16x640xf32> to vector<16x640xbf16>
    %c0_11 = arith.constant 0 : index
    %c0_12 = arith.constant 0 : index
    %32 = vector.load %arg4[%c0_11, %c0_12] : memref<640x128xbf16, #tpu.memory_space<vmem>>, vector<640x128xbf16>
    %cst_13 = arith.constant dense<0.000000e+00> : vector<16x128xf32>
    %33 = tpu.matmul %31, %32, %cst_13 {dimension_numbers = #tpu.dot_dimension_numbers<[1], [0], [0], [1], [0, 0, 1, 1], [], []>} : vector<16x640xbf16>, vector<640x128xbf16>, vector<16x128xf32> -> vector<16x128xf32>
    %c0_14 = arith.constant 0 : index
    %c0_15 = arith.constant 0 : index
    %34 = vector.load %arg5[%c0_14, %c0_15] : memref<1x128xf32, #tpu.memory_space<vmem>>, vector<1x128xf32>
    %35 = vector.broadcast %34 : vector<1x128xf32> to vector<16x128xf32>
    %36 = arith.addf %33, %35 : vector<16x128xf32>
    %cst_16 = arith.constant 0.000000e+00 : f32
    %37 = vector.broadcast %cst_16 : f32 to vector<16x128xf32>
    %38 = arith.maximumf %36, %37 : vector<16x128xf32>
    %c0_17 = arith.constant 0 : index
    %c0_18 = arith.constant 0 : index
    %39 = vector.load %arg8[%c0_17, %c0_18] : memref<16x128xf32, #tpu.memory_space<vmem>>, vector<16x128xf32>
    tpu.vector_store %arg8[%c0_17, %c0_18], %38 {strides = array<i32>} : memref<16x128xf32, #tpu.memory_space<vmem>>, vector<16x128xf32>,
    %cst_19 = arith.constant dense<0.000000e+00> : vector<128xf32>
    %40 = vector.multi_reduction <add>, %38, %cst_19 [0] : vector<16x128xf32> to vector<128xf32>
    %41 = vector.shape_cast %40 : vector<128xf32> to vector<1x128xf32>
    %cst_20 = arith.constant 1.600000e+01 : f32
    %42 = vector.broadcast %cst_20 : f32 to vector<1x128xf32>
    %43 = arith.divf %41, %42 : vector<1x128xf32>
    %c0_21 = arith.constant 0 : index
    %c0_22 = arith.constant 0 : index
    %44 = vector.load %arg9[%c0_21, %c0_22] : memref<1x128xf32, #tpu.memory_space<vmem>>, vector<1x128xf32>
    tpu.vector_store %arg9[%c0_21, %c0_22], %43 {strides = array<i32>} : memref<1x128xf32, #tpu.memory_space<vmem>>, vector<1x128xf32>,
    %45 = arith.truncf %43 : vector<1x128xf32> to vector<1x128xbf16>
    %c0_23 = arith.constant 0 : index
    %c0_24 = arith.constant 0 : index
    %46 = vector.load %arg6[%c0_23, %c0_24] : memref<128x128xbf16, #tpu.memory_space<vmem>>, vector<128x128xbf16>
    %cst_25 = arith.constant dense<0.000000e+00> : vector<1x128xf32>
    %47 = tpu.matmul %45, %46, %cst_25 {dimension_numbers = #tpu.dot_dimension_numbers<[1], [0], [0], [1], [0, 0, 1, 1], [], []>} : vector<1x128xbf16>, vector<128x128xbf16>, vector<1x128xf32> -> vector<1x128xf32>
    %c0_26 = arith.constant 0 : index
    %c0_27 = arith.constant 0 : index
    %48 = vector.load %arg7[%c0_26, %c0_27] : memref<1x128xf32, #tpu.memory_space<vmem>>, vector<1x128xf32>
    %49 = arith.addf %47, %48 : vector<1x128xf32>
    %c0_28 = arith.constant 0 : index
    %c0_29 = arith.constant 0 : index
    %50 = vector.load %arg10[%c0_28, %c0_29] : memref<1x128xf32, #tpu.memory_space<vmem>>, vector<1x128xf32>
    tpu.vector_store %arg10[%c0_28, %c0_29], %49 {strides = array<i32>} : memref<1x128xf32, #tpu.memory_space<vmem>>, vector<1x128xf32>,
    return
  }
  func.func @transform_0(%arg0: i32) -> (i32, i32, i32, i32) {
    %c0_i32 = arith.constant 0 : i32
    %c0_i32_0 = arith.constant 0 : i32
    %c0_i32_1 = arith.constant 0 : i32
    %c0_i32_2 = arith.constant 0 : i32
    %c0_i32_3 = arith.constant 0 : i32
    return %c0_i32, %c0_i32_0, %c0_i32_1, %c0_i32_2 : i32, i32, i32, i32
  }
  func.func @transform_1(%arg0: i32) -> (i32, i32) {
    %c0_i32 = arith.constant 0 : i32
    %c0_i32_0 = arith.constant 0 : i32
    %c0_i32_1 = arith.constant 0 : i32
    return %c0_i32, %c0_i32_0 : i32, i32
  }
  func.func @transform_2(%arg0: i32) -> (i32, i32) {
    %c0_i32 = arith.constant 0 : i32
    %c0_i32_0 = arith.constant 0 : i32
    %c0_i32_1 = arith.constant 0 : i32
    return %c0_i32, %c0_i32_0 : i32, i32
  }
  func.func @transform_3(%arg0: i32) -> (i32, i32) {
    %c0_i32 = arith.constant 0 : i32
    %c0_i32_0 = arith.constant 0 : i32
    %c0_i32_1 = arith.constant 0 : i32
    return %c0_i32, %c0_i32_0 : i32, i32
  }
  func.func @transform_4(%arg0: i32) -> (i32, i32) {
    %c0_i32 = arith.constant 0 : i32
    %c0_i32_0 = arith.constant 0 : i32
    %c0_i32_1 = arith.constant 0 : i32
    return %c0_i32, %c0_i32_0 : i32, i32
  }
  func.func @transform_5(%arg0: i32) -> (i32, i32) {
    %c0_i32 = arith.constant 0 : i32
    %c0_i32_0 = arith.constant 0 : i32
    %c0_i32_1 = arith.constant 0 : i32
    return %c0_i32, %c0_i32_0 : i32, i32
  }
  func.func @transform_6(%arg0: i32) -> (i32, i32) {
    %c0_i32 = arith.constant 0 : i32
    %c0_i32_0 = arith.constant 0 : i32
    %c0_i32_1 = arith.constant 0 : i32
    return %c0_i32, %c0_i32_0 : i32, i32
  }
  func.func @transform_7(%arg0: i32) -> (i32, i32) {
    %c0_i32 = arith.constant 0 : i32
    %c0_i32_0 = arith.constant 0 : i32
    %c0_i32_1 = arith.constant 0 : i32
    return %c0_i32, %c0_i32_0 : i32, i32
  }
  func.func @transform_8(%arg0: i32) -> (i32, i32) {
    %c0_i32 = arith.constant 0 : i32
    %c0_i32_0 = arith.constant 0 : i32
    %c0_i32_1 = arith.constant 0 : i32
    return %c0_i32, %c0_i32_0 : i32, i32
  }
  func.func @transform_9(%arg0: i32) -> (i32, i32) {
    %c0_i32 = arith.constant 0 : i32
    %c0_i32_0 = arith.constant 0 : i32
    %c0_i32_1 = arith.constant 0 : i32
    return %c0_i32, %c0_i32_0 : i32, i32
  }
}

</mosaic_0001>

<llo_original>
// kernel: tpu_custom_call.1
$region0: #{tpu_custom_call.1}
  #allocation0 [shape = 'u32[]', space=smem, size = 0x4, offset = 0x4, fixed_abs, tag = 'smem constant byte address 0x4 - core index']
  #allocation1 [shape = 'u32[144,128]{1,0:T(1,128)}', space=vmem, size = 0x12000, scoped, tag = 'internal scratch']
  %s0 = inlined_call_operand.hbm [shape: f32[3,2,16,32], index: 0, kind: input, shape index: {}]
  %s1 = inlined_call_operand.hbm [shape: bf16[320,128], index: 1, kind: input, shape index: {}]
  %s2 = inlined_call_operand.vmem [shape: f32[1,128], index: 2, kind: input, shape index: {}]
  %s3 = inlined_call_operand.hbm [shape: bf16[640,128], index: 3, kind: input, shape index: {}]
  %s4 = inlined_call_operand.vmem [shape: f32[1,128], index: 4, kind: input, shape index: {}]
  %s5 = inlined_call_operand.hbm [shape: bf16[128,128], index: 5, kind: input, shape index: {}]
  %s6 = inlined_call_operand.vmem [shape: f32[1,128], index: 6, kind: input, shape index: {}]
  %s7 = inlined_call_operand.hbm [shape: f32[16,128], index: 7, kind: output, shape index: {0}]
  %s8 = inlined_call_operand.hbm [shape: f32[1,128], index: 8, kind: output, shape index: {1}]
  %s9 = inlined_call_operand.hbm [shape: f32[1,128], index: 9, kind: output, shape index: {2}]
  %10 = xla_tuple %s7, %s8, %s9
  %s11 = sld [smem:[#allocation0]]
  $region70: #{tpu_custom_call.1} parent=0
    _
  %s13 = ssub.s32 1, %s11
  %s14 = scalar_select 0, %s13, %s11
  $region1: #{tpu_custom_call.1} parent=0
    #allocation2 [shape = 'u8[49152]{0}', space=vmem, size = 0xc000, scoped, tag = 'input window, operand 0, single buffered']
    #allocation3 [shape = 's32[1]{0}', space=sflag, size = 0x4, scoped, tag = 'scoped memory for tpu_custom_call.1']
    #allocation4 [shape = 's32[1]{0}', space=sflag, size = 0x4, scoped, tag = 'scoped memory for tpu_custom_call.1']
    #allocation5 [shape = 'u8[81920]{0}', space=vmem, size = 0x14000, scoped, tag = 'input window, operand 1, single buffered']
    #allocation6 [shape = 's32[1]{0}', space=sflag, size = 0x4, scoped, tag = 'scoped memory for tpu_custom_call.1']
    #allocation7 [shape = 'u8[163840]{0}', space=vmem, size = 0x28000, scoped, tag = 'input window, operand 3, single buffered']
    #allocation8 [shape = 'u8[32768]{0}', space=vmem, size = 0x8000, scoped, tag = 'input window, operand 5, single buffered']
    #allocation9 [shape = 's32[1]{0}', space=sflag, size = 0x4, scoped, tag = 'scoped memory for tpu_custom_call.1']
    #allocation10 [shape = 'u8[8192]{0}', space=vmem, size = 0x2000, scoped, tag = 'output window, operand 0, single buffered']
    #allocation11 [shape = 'u8[512]{0}', space=vmem, size = 0x400, scoped, tag = 'output window, operand 1, single buffered']
    #allocation12 [shape = 's32[1]{0}', space=sflag, size = 0x4, scoped, tag = 'scoped memory for tpu_custom_call.1']
    #allocation13 [shape = 'u8[512]{0}', space=vmem, size = 0x400, scoped, tag = 'output window, operand 2, single buffered']
    %15 = vsyncpa [#allocation3], 0
    %16 = vsyncpa [#allocation6], 0
    %17 = vsyncpa [#allocation9], 0
    %18 = vsyncpa [#allocation4], 0
    %19 = vsyncpa [#allocation12], 0
    // Predicated region
    $region2: #{tpu_custom_call.1} parent=1 // pred_check
      _
    $region3: #{tpu_custom_call.1} parent=1 // pred_check_branch
      %21 = sbr.rel (0) target = $region5
    $region4: #{tpu_custom_call.1} parent=1 // pred_region
      %s23 = ssub.s32 1536, 1536
      %24 = vsyncadd [#allocation3], %s23
      %s25 = sshll.u32 [#allocation2], 4
      %s26 = int_to_ptr.vmem [resolvable:$true] %s25
      %31 = dma.hbm_to_vmem [thread:$0]  %s0, 1536, %s26, [#allocation3], 128, 128, 8
    $region5: #{tpu_custom_call.1} parent=1 // pred_fallthru
      _
    // Predicated region
    $region6: #{tpu_custom_call.1} parent=1 // pred_check
      _
    $region7: #{tpu_custom_call.1} parent=1 // pred_check_branch
      %33 = sbr.rel (0) target = $region9
    $region8: #{tpu_custom_call.1} parent=1 // pred_region
      %s35 = ssub.s32 2560, 2560
      %36 = vsyncadd [#allocation6], %s35
      %s37 = sshll.u32 [#allocation5], 4
      %s38 = int_to_ptr.vmem [resolvable:$true] %s37
      %43 = dma.hbm_to_vmem [thread:$0]  %s1, 2560, %s38, [#allocation6], 64, 64, 4
    $region9: #{tpu_custom_call.1} parent=1 // pred_fallthru
      _
    // Predicated region
    $region10: #{tpu_custom_call.1} parent=1 // pred_check
      _
    $region11: #{tpu_custom_call.1} parent=1 // pred_check_branch
      %45 = sbr.rel (0) target = $region13
    $region12: #{tpu_custom_call.1} parent=1 // pred_region
      _
    $region13: #{tpu_custom_call.1} parent=1 // pred_fallthru
      _
    // Predicated region
    $region14: #{tpu_custom_call.1} parent=1 // pred_check
      _
    $region15: #{tpu_custom_call.1} parent=1 // pred_check_branch
      %47 = sbr.rel (0) target = $region17
    $region16: #{tpu_custom_call.1} parent=1 // pred_region
      %s49 = ssub.s32 5120, 5120
      %50 = vsyncadd [#allocation6], %s49
      %s51 = sshll.u32 [#allocation7], 4
      %s52 = int_to_ptr.vmem [resolvable:$true] %s51
      %57 = dma.hbm_to_vmem [thread:$0]  %s3, 5120, %s52, [#allocation6], 64, 64, 4
    $region17: #{tpu_custom_call.1} parent=1 // pred_fallthru
      _
    // Predicated region
    $region18: #{tpu_custom_call.1} parent=1 // pred_check
      _
    $region19: #{tpu_custom_call.1} parent=1 // pred_check_branch
      %59 = sbr.rel (0) target = $region21
    $region20: #{tpu_custom_call.1} parent=1 // pred_region
      _
    $region21: #{tpu_custom_call.1} parent=1 // pred_fallthru
      _
    // Predicated region
    $region22: #{tpu_custom_call.1} parent=1 // pred_check
      _
    $region23: #{tpu_custom_call.1} parent=1 // pred_check_branch
      %61 = sbr.rel (0) target = $region25
    $region24: #{tpu_custom_call.1} parent=1 // pred_region
      %s63 = ssub.s32 1024, 1024
      %64 = vsyncadd [#allocation9], %s63
      %s65 = sshll.u32 [#allocation8], 4
      %s66 = int_to_ptr.vmem [resolvable:$true] %s65
      %71 = dma.hbm_to_vmem [thread:$0]  %s5, 1024, %s66, [#allocation9], 64, 64, 4
    $region25: #{tpu_custom_call.1} parent=1 // pred_fallthru
      _
    // Predicated region
    $region26: #{tpu_custom_call.1} parent=1 // pred_check
      _
    $region27: #{tpu_custom_call.1} parent=1 // pred_check_branch
      %73 = sbr.rel (0) target = $region29
    $region28: #{tpu_custom_call.1} parent=1 // pred_region
      _
    $region29: #{tpu_custom_call.1} parent=1 // pred_fallthru
      _
    // Predicated region
    $region30: #{tpu_custom_call.1} parent=1 // pred_check
      _
    $region31: #{tpu_custom_call.1} parent=1 // pred_check_branch
      %75 = sbr.rel (0) target = $region33
    $region32: #{tpu_custom_call.1} parent=1 // pred_region
      %76 = dma.done [#allocation3], 1536
    $region33: #{tpu_custom_call.1} parent=1 // pred_fallthru
      _
    // Predicated region
    $region34: #{tpu_custom_call.1} parent=1 // pred_check
      _
    $region35: #{tpu_custom_call.1} parent=1 // pred_check_branch
      %78 = sbr.rel (0) target = $region37
    $region36: #{tpu_custom_call.1} parent=1 // pred_region
      %79 = dma.done [#allocation6], 2560
    $region37: #{tpu_custom_call.1} parent=1 // pred_fallthru
      _
    // Predicated region
    $region38: #{tpu_custom_call.1} parent=1 // pred_check
      _
    $region39: #{tpu_custom_call.1} parent=1 // pred_check_branch
      %81 = sbr.rel (0) target = $region41
    $region40: #{tpu_custom_call.1} parent=1 // pred_region
      %82 = dma.done [#allocation6], 5120
    $region41: #{tpu_custom_call.1} parent=1 // pred_fallthru
      _
    // Predicated region
    $region42: #{tpu_custom_call.1} parent=1 // pred_check
      _
    $region43: #{tpu_custom_call.1} parent=1 // pred_check_branch
      %84 = sbr.rel (0) target = $region45
    $region44: #{tpu_custom_call.1} parent=1 // pred_region
      %85 = dma.done [#allocation9], 1024
    $region45: #{tpu_custom_call.1} parent=1 // pred_fallthru
      _
    %v87 = vld [vmem:[#allocation2] sm:$0xff]
    %v88 = vld [vmem:[#allocation2 + $0x8] sm:$0xff]
    %v89 = vld [vmem:[#allocation2 + $0x10] sm:$0xff]
    %v90 = vld [vmem:[#allocation2 + $0x18] sm:$0xff]
    %v91 = vld [vmem:[#allocation2 + $0x20] sm:$0xff]
    %v92 = vld [vmem:[#allocation2 + $0x28] sm:$0xff]
    %v93 = vld [vmem:[#allocation2 + $0x30] sm:$0xff]
    %v94 = vld [vmem:[#allocation2 + $0x38] sm:$0xff]
    %v95 = vld [vmem:[#allocation2 + $0x40] sm:$0xff]
    %v96 = vld [vmem:[#allocation2 + $0x48] sm:$0xff]
    %v97 = vld [vmem:[#allocation2 + $0x50] sm:$0xff]
    %v98 = vld [vmem:[#allocation2 + $0x58] sm:$0xff]
    %vm99 = vcmask 261120
    %v100 = vsel %vm99, %v87, 0.0
    %v101 = vsel %vm99, %v91, 0.0
    %v102 = vadd.f32 %v100, %v101
    %v103 = vsel %vm99, %v95, 0.0
    %v104 = vadd.f32 %v102, %v103
    %v105 = vsel %vm99, %v88, 0.0
    %v106 = vsel %vm99, %v92, 0.0
    %v107 = vadd.f32 %v105, %v106
    %v108 = vsel %vm99, %v96, 0.0
    %v109 = vadd.f32 %v107, %v108
    %v110 = vsel %vm99, %v89, 0.0
    %v111 = vsel %vm99, %v93, 0.0
    %v112 = vadd.f32 %v110, %v111
    %v113 = vsel %vm99, %v97, 0.0
    %v114 = vadd.f32 %v112, %v113
    %v115 = vsel %vm99, %v90, 0.0
    %v116 = vsel %vm99, %v94, 0.0
    %v117 = vadd.f32 %v115, %v116
    %v118 = vsel %vm99, %v98, 0.0
    %v119 = vadd.f32 %v117, %v118
    %122 = vrot.lane.b32.xlu0 %v114, 32
    %v123 = vpop.permute.xlu0 %122
    %124 = vrot.lane.b32.xlu0 %v119, 32
    %v125 = vpop.permute.xlu0 %124
    %v128 = vsel %vm99, %v104, %v123
    %v129 = vsel %vm99, %v109, %v125
    %vm132 = vcmask 1041408
    %v133 = vrot.slane %v128, 6
    %v134 = vrot.slane %v129, 6
    %v135 = vsel %vm132, %v133, %v134
    %v139 = vsel %vm132, 0.0, %v133
    %v140 = vsel %vm132, %v134, 0.0
    %vm143 = vcmask 1046528
    %v144 = vrot.slane %v139, 1
    %v145 = vrot.slane %v135, 1
    %v146 = vsel %vm143, %v144, %v145
    %v147 = vrot.slane %v140, 1
    %v148 = vsel %vm143, %v145, %v147
    %149 = vrot.lane.b32.xlu0 %v146, 64
    %v150 = vpop.permute.xlu0 %149
    %151 = vrot.lane.b32.xlu0 %v148, 64
    %v152 = vpop.permute.xlu0 %151
    %vm155 = vcmask 1045504
    %v156 = vrot.slane %v139, 2
    %v157 = vrot.slane %v135, 2
    %v158 = vsel %vm155, %v156, %v157
    %v159 = vrot.slane %v140, 2
    %v160 = vsel %vm155, %v157, %v159
    %vm163 = vcmask 1044480
    %v164 = vrot.slane %v139, 3
    %v165 = vrot.slane %v135, 3
    %v166 = vsel %vm163, %v164, %v165
    %v167 = vrot.slane %v140, 3
    %v168 = vsel %vm163, %v165, %v167
    %169 = vrot.lane.b32.xlu0 %v166, 64
    %v170 = vpop.permute.xlu0 %169
    %171 = vrot.lane.b32.xlu0 %v168, 64
    %v172 = vpop.permute.xlu0 %171
    %vm175 = vcmask 1043456
    %v176 = vrot.slane %v139, 4
    %v177 = vrot.slane %v135, 4
    %v178 = vsel %vm175, %v176, %v177
    %v179 = vrot.slane %v140, 4
    %v180 = vsel %vm175, %v177, %v179
    %vm183 = vcmask 523264
    %v184 = vsel %vm183, %v139, %v150
    %v185 = vsel %vm183, %v135, %v152
    %v186 = vsel %vm183, %v158, %v170
    %v187 = vsel %vm183, %v160, %v172
    %v188 = vpack.c.bf16 %v185, %v184
    %v189 = vpack.c.bf16 %v187, %v186
    %v190 = vpack.c.bf16 %v180, %v178
    %v191 = vld [vmem:[#allocation5] sm:$0xf]
    %v192 = vld [vmem:[#allocation5 + $0x4] sm:$0xf]
    %v193 = vld [vmem:[#allocation5 + $0x8] sm:$0xf]
    %v194 = vld [vmem:[#allocation5 + $0xc] sm:$0xf]
    %v195 = vld [vmem:[#allocation5 + $0x10] sm:$0xf]
    %v196 = vld [vmem:[#allocation5 + $0x14] sm:$0xf]
    %v197 = vld [vmem:[#allocation5 + $0x18] sm:$0xf]
    %v198 = vld [vmem:[#allocation5 + $0x1c] sm:$0xf]
    %v199 = vld [vmem:[#allocation5 + $0x20] sm:$0xf]
    %v200 = vld [vmem:[#allocation5 + $0x24] sm:$0xf]
    %v201 = vld [vmem:[#allocation5 + $0x28] sm:$0xf]
    %v202 = vld [vmem:[#allocation5 + $0x2c] sm:$0xf]
    %v203 = vld [vmem:[#allocation5 + $0x30] sm:$0xf]
    %v204 = vld [vmem:[#allocation5 + $0x34] sm:$0xf]
    %v205 = vld [vmem:[#allocation5 + $0x38] sm:$0xf]
    %v206 = vld [vmem:[#allocation5 + $0x3c] sm:$0xf]
    %v207 = vld [vmem:[#allocation5 + $0x40] sm:$0xf]
    %v208 = vld [vmem:[#allocation5 + $0x44] sm:$0xf]
    %v209 = vld [vmem:[#allocation5 + $0x48] sm:$0xf]
    %v210 = vld [vmem:[#allocation5 + $0x4c] sm:$0xf]
    %v211 = vld [vmem:[#allocation5 + $0x50] sm:$0xf]
    %v212 = vld [vmem:[#allocation5 + $0x54] sm:$0xf]
    %v213 = vld [vmem:[#allocation5 + $0x58] sm:$0xf]
    %v214 = vld [vmem:[#allocation5 + $0x5c] sm:$0xf]
    %v215 = vld [vmem:[#allocation5 + $0x60] sm:$0xf]
    %v216 = vld [vmem:[#allocation5 + $0x64] sm:$0xf]
    %v217 = vld [vmem:[#allocation5 + $0x68] sm:$0xf]
    %v218 = vld [vmem:[#allocation5 + $0x6c] sm:$0xf]
    %v219 = vld [vmem:[#allocation5 + $0x70] sm:$0xf]
    %v220 = vld [vmem:[#allocation5 + $0x74] sm:$0xf]
    %v221 = vld [vmem:[#allocation5 + $0x78] sm:$0xf]
    %v222 = vld [vmem:[#allocation5 + $0x7c] sm:$0xf]
    %v223 = vld [vmem:[#allocation5 + $0x80] sm:$0xf]
    %v224 = vld [vmem:[#allocation5 + $0x84] sm:$0xf]
    %v225 = vld [vmem:[#allocation5 + $0x88] sm:$0xf]
    %v226 = vld [vmem:[#allocation5 + $0x8c] sm:$0xf]
    %v227 = vld [vmem:[#allocation5 + $0x90] sm:$0xf]
    %v228 = vld [vmem:[#allocation5 + $0x94] sm:$0xf]
    %v229 = vld [vmem:[#allocation5 + $0x98] sm:$0xf]
    %v230 = vld [vmem:[#allocation5 + $0x9c] sm:$0xf]
    %v231 = vld [vmem:[%s2] sm:$0x1]
    %v233 = vlaneseq
    %v234 = vshrl.u32 %v233, 7
    %v235 = vsub.s32 0, %v234
    %v236 = vrot.slane %v231, %v235
    %v278 = vunpack.c.l.b16 %v191
    %v279 = vunpack.c.l.b16 %v192
    %v280 = vunpack.c.l.b16 %v193
    %v281 = vunpack.c.l.b16 %v194
    %v282 = vunpack.c.l.b16 %v195
    %v283 = vunpack.c.l.b16 %v196
    %v284 = vunpack.c.l.b16 %v197
    %v285 = vunpack.c.l.b16 %v198
    %v286 = vunpack.c.l.b16 %v199
    %v287 = vunpack.c.l.b16 %v200
    %v288 = vunpack.c.l.b16 %v201
    %v289 = vunpack.c.l.b16 %v202
    %v290 = vunpack.c.l.b16 %v203
    %v291 = vunpack.c.l.b16 %v204
    %v292 = vunpack.c.l.b16 %v205
    %v293 = vunpack.c.l.b16 %v206
    %v294 = vunpack.c.l.b16 %v207
    %v295 = vunpack.c.l.b16 %v208
    %v296 = vunpack.c.l.b16 %v209
    %v297 = vunpack.c.l.b16 %v210
    %v298 = vunpack.c.l.b16 %v211
    %v299 = vunpack.c.l.b16 %v212
    %v300 = vunpack.c.l.b16 %v213
    %v301 = vunpack.c.l.b16 %v214
    %v302 = vunpack.c.l.b16 %v215
    %v303 = vunpack.c.l.b16 %v216
    %v304 = vunpack.c.l.b16 %v217
    %v305 = vunpack.c.l.b16 %v218
    %v306 = vunpack.c.l.b16 %v219
    %v307 = vunpack.c.l.b16 %v220
    %v308 = vunpack.c.l.b16 %v221
    %v309 = vunpack.c.l.b16 %v222
    %v310 = vunpack.c.l.b16 %v223
    %v311 = vunpack.c.l.b16 %v224
    %v312 = vunpack.c.l.b16 %v225
    %v313 = vunpack.c.l.b16 %v226
    %v314 = vunpack.c.l.b16 %v227
    %v315 = vunpack.c.l.b16 %v228
    %v316 = vunpack.c.l.b16 %v229
    %v317 = vunpack.c.l.b16 %v230
    %v318 = vpack.c.b16 %v279, %v278
    %v319 = vpack.c.b16 %v281, %v280
    %v320 = vpack.c.b16 %v283, %v282
    %v321 = vpack.c.b16 %v285, %v284
    %v322 = vpack.c.b16 %v287, %v286
    %v323 = vpack.c.b16 %v289, %v288
    %v324 = vpack.c.b16 %v291, %v290
    %v325 = vpack.c.b16 %v293, %v292
    %v326 = vpack.c.b16 %v295, %v294
    %v327 = vpack.c.b16 %v297, %v296
    %v328 = vpack.c.b16 %v299, %v298
    %v329 = vpack.c.b16 %v301, %v300
    %v330 = vpack.c.b16 %v303, %v302
    %v331 = vpack.c.b16 %v305, %v304
    %v332 = vpack.c.b16 %v307, %v306
    %v333 = vpack.c.b16 %v309, %v308
    %v334 = vpack.c.b16 %v311, %v310
    %v335 = vpack.c.b16 %v313, %v312
    %v336 = vpack.c.b16 %v315, %v314
    %v337 = vpack.c.b16 %v317, %v316
    %v359 = vsel %vm183, %v190, 0
    %361 = vmatprep.subr.bf16.mxu0 0
    %362 = vmatpush1.bf16.msra.mxu0 %v318
    %363 = vmatprep.subr.bf16.mxu0 0
    %364 = vmatpush1.bf16.msra.mxu0 %v319
    %365 = vmatprep.subr.bf16.mxu0 0
    %366 = vmatpush1.bf16.msra.mxu0 %v320
    %367 = vmatprep.subr.bf16.mxu0 0
    %368 = vmatpush1.bf16.msra.mxu0 %v321
    %369 = vmatprep.subr.bf16.mxu0 0
    %370 = vmatpush1.bf16.msra.mxu0 %v322
    %371 = vmatprep.subr.bf16.mxu0 0
    %372 = vmatpush1.bf16.msra.mxu0 %v323
    %373 = vmatprep.subr.bf16.mxu0 0
    %374 = vmatpush1.bf16.msra.mxu0 %v324
    %375 = vmatprep.subr.bf16.mxu0 0
    %376 = vmatpush1.bf16.msra.mxu0 %v325
    %377 = vmatprep.subr.bf16.mxu0 0
    %378 = vmatpush1.bf16.msra.mxu0 %v326
    %379 = vmatprep.subr.bf16.mxu0 0
    %380 = vmatpush1.bf16.msra.mxu0 %v327
    %381 = vmatprep.subr.bf16.mxu0 0
    %382 = vmatpush1.bf16.msra.mxu0 %v328
    %383 = vmatprep.subr.bf16.mxu0 0
    %384 = vmatpush1.bf16.msra.mxu0 %v329
    %385 = vmatprep.subr.bf16.mxu0 0
    %386 = vmatpush1.bf16.msra.mxu0 %v330
    %387 = vmatprep.subr.bf16.mxu0 0
    %388 = vmatpush1.bf16.msra.mxu0 %v331
    %389 = vmatprep.subr.bf16.mxu0 0
    %390 = vmatpush1.bf16.msra.mxu0 %v332
    %391 = vmatprep.subr.bf16.mxu0 0
    %392 = vmatpush1.bf16.msra.mxu0 %v333
    %393 = vmatprep.mubr.bf16.mxu0 %v189
    %394 = vmatmul.mubr.bf16.gmra.mrb[0].mxu0 %v188
    %v395 = vpop.f32.mrb[0].mxu0
    %v396 = vadd.f32 %v236, %v395
    %v397 = vpop.f32.mrb[0].mxu0
    %v398 = vpop.f32.mrb[0].mxu0
    %v399 = vadd.f32 %v236, %v398
    %v400 = vpop.f32.mrb[0].mxu0
    %401 = vdwg.mxu0
    %402 = vmatprep.subr.bf16.mxu0 0
    %403 = vmatpush1.bf16.msra.mxu0 %v334
    %404 = vmatprep.subr.bf16.mxu0 0
    %405 = vmatpush1.bf16.msra.mxu0 %v335
    %406 = vmatprep.subr.bf16.mxu0 0
    %407 = vmatpush1.bf16.msra.mxu0 %v336
    %408 = vmatprep.subr.bf16.mxu0 0
    %409 = vmatpush1.bf16.msra.mxu0 %v337
    %410 = vmatprep.subr.bf16.mxu0 0
    %411 = vmatpush1.bf16.msra.mxu0 0
    %412 = vmatprep.subr.bf16.mxu0 0
    %413 = vmatpush1.bf16.msra.mxu0 0
    %414 = vmatprep.subr.bf16.mxu0 0
    %415 = vmatpush1.bf16.msra.mxu0 0
    %416 = vmatprep.subr.bf16.mxu0 0
    %417 = vmatpush1.bf16.msra.mxu0 0
    %418 = vmatprep.subr.bf16.mxu0 0
    %419 = vmatpush1.bf16.msra.mxu0 0
    %420 = vmatprep.subr.bf16.mxu0 0
    %421 = vmatpush1.bf16.msra.mxu0 0
    %422 = vmatprep.subr.bf16.mxu0 0
    %423 = vmatpush1.bf16.msra.mxu0 0
    %424 = vmatprep.subr.bf16.mxu0 0
    %425 = vmatpush1.bf16.msra.mxu0 0
    %426 = vmatprep.subr.bf16.mxu0 0
    %427 = vmatpush1.bf16.msra.mxu0 0
    %428 = vmatprep.subr.bf16.mxu0 0
    %429 = vmatpush1.bf16.msra.mxu0 0
    %430 = vmatprep.subr.bf16.mxu0 0
    %431 = vmatpush1.bf16.msra.mxu0 0
    %432 = vmatprep.subr.bf16.mxu0 0
    %433 = vmatpush1.bf16.msra.mxu0 0
    %434 = vmatprep.mubr.bf16.mxu0 0
    %435 = vmatmul.mubr.bf16.gmra.mrb[0].mxu0 %v359
    %v436 = vpop.f32.mrb[0].mxu0
    %v437 = vadd.f32 %v396, %v436
    %v438 = vpop.f32.mrb[0].mxu0
    %v439 = vpop.f32.mrb[0].mxu0
    %v440 = vadd.f32 %v399, %v439
    %v441 = vpop.f32.mrb[0].mxu0
    %442 = vdwg.mxu0
    %v443 = vmax.f32 %v437, 0.0
    %v444 = vmax.f32 %v440, 0.0
    %v447 = vrot.slane %v443, 6
    %v448 = vrot.slane %v444, 6
    %v449 = vsel %vm132, %v447, %v448
    %v453 = vsel %vm132, 0.0, %v447
    %v454 = vsel %vm132, %v448, 0.0
    %v457 = vrot.slane %v453, 1
    %v458 = vrot.slane %v449, 1
    %v459 = vsel %vm143, %v457, %v458
    %v460 = vrot.slane %v454, 1
    %v461 = vsel %vm143, %v458, %v460
    %v464 = vrot.slane %v453, 2
    %v465 = vrot.slane %v449, 2
    %v466 = vsel %vm155, %v464, %v465
    %v467 = vrot.slane %v454, 2
    %v468 = vsel %vm155, %v465, %v467
    %v471 = vrot.slane %v453, 3
    %v472 = vrot.slane %v449, 3
    %v473 = vsel %vm163, %v471, %v472
    %v474 = vrot.slane %v454, 3
    %v475 = vsel %vm163, %v472, %v474
    %v478 = vrot.slane %v453, 4
    %v479 = vrot.slane %v449, 4
    %v480 = vsel %vm175, %v478, %v479
    %v481 = vrot.slane %v454, 4
    %v482 = vsel %vm175, %v479, %v481
    %v485 = vpack.c.bf16 %v449, %v453
    %v486 = vpack.c.bf16 %v461, %v459
    %v487 = vpack.c.bf16 %v468, %v466
    %v488 = vpack.c.bf16 %v475, %v473
    %v489 = vpack.c.bf16 %v482, %v480
    %v490 = vld [vmem:[#allocation7] sm:$0xf]
    %v491 = vld [vmem:[#allocation7 + $0x4] sm:$0xf]
    %v492 = vld [vmem:[#allocation7 + $0x8] sm:$0xf]
    %v493 = vld [vmem:[#allocation7 + $0xc] sm:$0xf]
    %v494 = vld [vmem:[#allocation7 + $0x10] sm:$0xf]
    %v495 = vld [vmem:[#allocation7 + $0x14] sm:$0xf]
    %v496 = vld [vmem:[#allocation7 + $0x18] sm:$0xf]
    %v497 = vld [vmem:[#allocation7 + $0x1c] sm:$0xf]
    %v498 = vld [vmem:[#allocation7 + $0x20] sm:$0xf]
    %v499 = vld [vmem:[#allocation7 + $0x24] sm:$0xf]
    %v500 = vld [vmem:[#allocation7 + $0x28] sm:$0xf]
    %v501 = vld [vmem:[#allocation7 + $0x2c] sm:$0xf]
    %v502 = vld [vmem:[#allocation7 + $0x30] sm:$0xf]
    %v503 = vld [vmem:[#allocation7 + $0x34] sm:$0xf]
    %v504 = vld [vmem:[#allocation7 + $0x38] sm:$0xf]
    %v505 = vld [vmem:[#allocation7 + $0x3c] sm:$0xf]
    %v506 = vld [vmem:[#allocation7 + $0x40] sm:$0xf]
    %v507 = vld [vmem:[#allocation7 + $0x44] sm:$0xf]
    %v508 = vld [vmem:[#allocation7 + $0x48] sm:$0xf]
    %v509 = vld [vmem:[#allocation7 + $0x4c] sm:$0xf]
    %v510 = vld [vmem:[#allocation7 + $0x50] sm:$0xf]
    %v511 = vld [vmem:[#allocation7 + $0x54] sm:$0xf]
    %v512 = vld [vmem:[#allocation7 + $0x58] sm:$0xf]
    %v513 = vld [vmem:[#allocation7 + $0x5c] sm:$0xf]
    %v514 = vld [vmem:[#allocation7 + $0x60] sm:$0xf]
    %v515 = vld [vmem:[#allocation7 + $0x64] sm:$0xf]
    %v516 = vld [vmem:[#allocation7 + $0x68] sm:$0xf]
    %v517 = vld [vmem:[#allocation7 + $0x6c] sm:$0xf]
    %v518 = vld [vmem:[#allocation7 + $0x70] sm:$0xf]
    %v519 = vld [vmem:[#allocation7 + $0x74] sm:$0xf]
    %v520 = vld [vmem:[#allocation7 + $0x78] sm:$0xf]
    %v521 = vld [vmem:[#allocation7 + $0x7c] sm:$0xf]
    %v522 = vld [vmem:[#allocation7 + $0x80] sm:$0xf]
    %v523 = vld [vmem:[#allocation7 + $0x84] sm:$0xf]
    %v524 = vld [vmem:[#allocation7 + $0x88] sm:$0xf]
    %v525 = vld [vmem:[#allocation7 + $0x8c] sm:$0xf]
    %v526 = vld [vmem:[#allocation7 + $0x90] sm:$0xf]
    %v527 = vld [vmem:[#allocation7 + $0x94] sm:$0xf]
    %v528 = vld [vmem:[#allocation7 + $0x98] sm:$0xf]
    %v529 = vld [vmem:[#allocation7 + $0x9c] sm:$0xf]
    %v530 = vld [vmem:[#allocation7 + $0xa0] sm:$0xf]
    %v531 = vld [vmem:[#allocation7 + $0xa4] sm:$0xf]
    %v532 = vld [vmem:[#allocation7 + $0xa8] sm:$0xf]
    %v533 = vld [vmem:[#allocation7 + $0xac] sm:$0xf]
    %v534 = vld [vmem:[#allocation7 + $0xb0] sm:$0xf]
    %v535 = vld [vmem:[#allocation7 + $0xb4] sm:$0xf]
    %v536 = vld [vmem:[#allocation7 + $0xb8] sm:$0xf]
    %v537 = vld [vmem:[#allocation7 + $0xbc] sm:$0xf]
    %v538 = vld [vmem:[#allocation7 + $0xc0] sm:$0xf]
    %v539 = vld [vmem:[#allocation7 + $0xc4] sm:$0xf]
    %v540 = vld [vmem:[#allocation7 + $0xc8] sm:$0xf]
    %v541 = vld [vmem:[#allocation7 + $0xcc] sm:$0xf]
    %v542 = vld [vmem:[#allocation7 + $0xd0] sm:$0xf]
    %v543 = vld [vmem:[#allocation7 + $0xd4] sm:$0xf]
    %v544 = vld [vmem:[#allocation7 + $0xd8] sm:$0xf]
    %v545 = vld [vmem:[#allocation7 + $0xdc] sm:$0xf]
    %v546 = vld [vmem:[#allocation7 + $0xe0] sm:$0xf]
    %v547 = vld [vmem:[#allocation7 + $0xe4] sm:$0xf]
    %v548 = vld [vmem:[#allocation7 + $0xe8] sm:$0xf]
    %v549 = vld [vmem:[#allocation7 + $0xec] sm:$0xf]
    %v550 = vld [vmem:[#allocation7 + $0xf0] sm:$0xf]
    %v551 = vld [vmem:[#allocation7 + $0xf4] sm:$0xf]
    %v552 = vld [vmem:[#allocation7 + $0xf8] sm:$0xf]
    %v553 = vld [vmem:[#allocation7 + $0xfc] sm:$0xf]
    %v554 = vld [vmem:[#allocation7 + $0x100] sm:$0xf]
    %v555 = vld [vmem:[#allocation7 + $0x104] sm:$0xf]
    %v556 = vld [vmem:[#allocation7 + $0x108] sm:$0xf]
    %v557 = vld [vmem:[#allocation7 + $0x10c] sm:$0xf]
    %v558 = vld [vmem:[#allocation7 + $0x110] sm:$0xf]
    %v559 = vld [vmem:[#allocation7 + $0x114] sm:$0xf]
    %v560 = vld [vmem:[#allocation7 + $0x118] sm:$0xf]
    %v561 = vld [vmem:[#allocation7 + $0x11c] sm:$0xf]
    %v562 = vld [vmem:[#allocation7 + $0x120] sm:$0xf]
    %v563 = vld [vmem:[#allocation7 + $0x124] sm:$0xf]
    %v564 = vld [vmem:[#allocation7 + $0x128] sm:$0xf]
    %v565 = vld [vmem:[#allocation7 + $0x12c] sm:$0xf]
    %v566 = vld [vmem:[#allocation7 + $0x130] sm:$0xf]
    %v567 = vld [vmem:[#allocation7 + $0x134] sm:$0xf]
    %v568 = vld [vmem:[#allocation7 + $0x138] sm:$0xf]
    %v569 = vld [vmem:[#allocation7 + $0x13c] sm:$0xf]
    %v570 = vld [vmem:[%s4] sm:$0x1]
    %v572 = vlaneseq
    %v573 = vshrl.u32 %v572, 7
    %v574 = vsub.s32 0, %v573
    %v575 = vrot.slane %v570, %v574
    %v657 = vunpack.c.l.b16 %v490
    %v658 = vunpack.c.l.b16 %v491
    %v659 = vunpack.c.l.b16 %v492
    %v660 = vunpack.c.l.b16 %v493
    %v661 = vunpack.c.l.b16 %v494
    %v662 = vunpack.c.l.b16 %v495
    %v663 = vunpack.c.l.b16 %v496
    %v664 = vunpack.c.l.b16 %v497
    %v665 = vunpack.c.l.b16 %v498
    %v666 = vunpack.c.l.b16 %v499
    %v667 = vunpack.c.l.b16 %v500
    %v668 = vunpack.c.l.b16 %v501
    %v669 = vunpack.c.l.b16 %v502
    %v670 = vunpack.c.l.b16 %v503
    %v671 = vunpack.c.l.b16 %v504
    %v672 = vunpack.c.l.b16 %v505
    %v673 = vunpack.c.l.b16 %v506
    %v674 = vunpack.c.l.b16 %v507
    %v675 = vunpack.c.l.b16 %v508
    %v676 = vunpack.c.l.b16 %v509
    %v677 = vunpack.c.l.b16 %v510
    %v678 = vunpack.c.l.b16 %v511
    %v679 = vunpack.c.l.b16 %v512
    %v680 = vunpack.c.l.b16 %v513
    %v681 = vunpack.c.l.b16 %v514
    %v682 = vunpack.c.l.b16 %v515
    %v683 = vunpack.c.l.b16 %v516
    %v684 = vunpack.c.l.b16 %v517
    %v685 = vunpack.c.l.b16 %v518
    %v686 = vunpack.c.l.b16 %v519
    %v687 = vunpack.c.l.b16 %v520
    %v688 = vunpack.c.l.b16 %v521
    %v689 = vunpack.c.l.b16 %v522
    %v690 = vunpack.c.l.b16 %v523
    %v691 = vunpack.c.l.b16 %v524
    %v692 = vunpack.c.l.b16 %v525
    %v693 = vunpack.c.l.b16 %v526
    %v694 = vunpack.c.l.b16 %v527
    %v695 = vunpack.c.l.b16 %v528
    %v696 = vunpack.c.l.b16 %v529
    %v697 = vunpack.c.l.b16 %v530
    %v698 = vunpack.c.l.b16 %v531
    %v699 = vunpack.c.l.b16 %v532
    %v700 = vunpack.c.l.b16 %v533
    %v701 = vunpack.c.l.b16 %v534
    %v702 = vunpack.c.l.b16 %v535
    %v703 = vunpack.c.l.b16 %v536
    %v704 = vunpack.c.l.b16 %v537
    %v705 = vunpack.c.l.b16 %v538
    %v706 = vunpack.c.l.b16 %v539
    %v707 = vunpack.c.l.b16 %v540
    %v708 = vunpack.c.l.b16 %v541
    %v709 = vunpack.c.l.b16 %v542
    %v710 = vunpack.c.l.b16 %v543
    %v711 = vunpack.c.l.b16 %v544
    %v712 = vunpack.c.l.b16 %v545
    %v713 = vunpack.c.l.b16 %v546
    %v714 = vunpack.c.l.b16 %v547
    %v715 = vunpack.c.l.b16 %v548
    %v716 = vunpack.c.l.b16 %v549
    %v717 = vunpack.c.l.b16 %v550
    %v718 = vunpack.c.l.b16 %v551
    %v719 = vunpack.c.l.b16 %v552
    %v720 = vunpack.c.l.b16 %v553
    %v721 = vunpack.c.l.b16 %v554
    %v722 = vunpack.c.l.b16 %v555
    %v723 = vunpack.c.l.b16 %v556
    %v724 = vunpack.c.l.b16 %v557
    %v725 = vunpack.c.l.b16 %v558
    %v726 = vunpack.c.l.b16 %v559
    %v727 = vunpack.c.l.b16 %v560
    %v728 = vunpack.c.l.b16 %v561
    %v729 = vunpack.c.l.b16 %v562
    %v730 = vunpack.c.l.b16 %v563
    %v731 = vunpack.c.l.b16 %v564
    %v732 = vunpack.c.l.b16 %v565
    %v733 = vunpack.c.l.b16 %v566
    %v734 = vunpack.c.l.b16 %v567
    %v735 = vunpack.c.l.b16 %v568
    %v736 = vunpack.c.l.b16 %v569
    %v737 = vpack.c.b16 %v658, %v657
    %v738 = vpack.c.b16 %v660, %v659
    %v739 = vpack.c.b16 %v662, %v661
    %v740 = vpack.c.b16 %v664, %v663
    %v741 = vpack.c.b16 %v666, %v665
    %v742 = vpack.c.b16 %v668, %v667
    %v743 = vpack.c.b16 %v670, %v669
    %v744 = vpack.c.b16 %v672, %v671
    %v745 = vpack.c.b16 %v674, %v673
    %v746 = vpack.c.b16 %v676, %v675
    %v747 = vpack.c.b16 %v678, %v677
    %v748 = vpack.c.b16 %v680, %v679
    %v749 = vpack.c.b16 %v682, %v681
    %v750 = vpack.c.b16 %v684, %v683
    %v751 = vpack.c.b16 %v686, %v685
    %v752 = vpack.c.b16 %v688, %v687
    %v753 = vpack.c.b16 %v690, %v689
    %v754 = vpack.c.b16 %v692, %v691
    %v755 = vpack.c.b16 %v694, %v693
    %v756 = vpack.c.b16 %v696, %v695
    %v757 = vpack.c.b16 %v698, %v697
    %v758 = vpack.c.b16 %v700, %v699
    %v759 = vpack.c.b16 %v702, %v701
    %v760 = vpack.c.b16 %v704, %v703
    %v761 = vpack.c.b16 %v706, %v705
    %v762 = vpack.c.b16 %v708, %v707
    %v763 = vpack.c.b16 %v710, %v709
    %v764 = vpack.c.b16 %v712, %v711
    %v765 = vpack.c.b16 %v714, %v713
    %v766 = vpack.c.b16 %v716, %v715
    %v767 = vpack.c.b16 %v718, %v717
    %v768 = vpack.c.b16 %v720, %v719
    %v769 = vpack.c.b16 %v722, %v721
    %v770 = vpack.c.b16 %v724, %v723
    %v771 = vpack.c.b16 %v726, %v725
    %v772 = vpack.c.b16 %v728, %v727
    %v773 = vpack.c.b16 %v730, %v729
    %v774 = vpack.c.b16 %v732, %v731
    %v775 = vpack.c.b16 %v734, %v733
    %v776 = vpack.c.b16 %v736, %v735
    %817 = vmatprep.subr.bf16.mxu0 0
    %818 = vmatpush1.bf16.msra.mxu0 %v737
    %819 = vmatprep.subr.bf16.mxu0 0
    %820 = vmatpush1.bf16.msra.mxu0 %v738
    %821 = vmatprep.subr.bf16.mxu0 0
    %822 = vmatpush1.bf16.msra.mxu0 %v739
    %823 = vmatprep.subr.bf16.mxu0 0
    %824 = vmatpush1.bf16.msra.mxu0 %v740
    %825 = vmatprep.subr.bf16.mxu0 0
    %826 = vmatpush1.bf16.msra.mxu0 %v741
    %827 = vmatprep.subr.bf16.mxu0 0
    %828 = vmatpush1.bf16.msra.mxu0 %v742
    %829 = vmatprep.subr.bf16.mxu0 0
    %830 = vmatpush1.bf16.msra.mxu0 %v743
    %831 = vmatprep.subr.bf16.mxu0 0
    %832 = vmatpush1.bf16.msra.mxu0 %v744
    %833 = vmatprep.subr.bf16.mxu0 0
    %834 = vmatpush1.bf16.msra.mxu0 %v745
    %835 = vmatprep.subr.bf16.mxu0 0
    %836 = vmatpush1.bf16.msra.mxu0 %v746
    %837 = vmatprep.subr.bf16.mxu0 0
    %838 = vmatpush1.bf16.msra.mxu0 %v747
    %839 = vmatprep.subr.bf16.mxu0 0
    %840 = vmatpush1.bf16.msra.mxu0 %v748
    %841 = vmatprep.subr.bf16.mxu0 0
    %842 = vmatpush1.bf16.msra.mxu0 %v749
    %843 = vmatprep.subr.bf16.mxu0 0
    %844 = vmatpush1.bf16.msra.mxu0 %v750
    %845 = vmatprep.subr.bf16.mxu0 0
    %846 = vmatpush1.bf16.msra.mxu0 %v751
    %847 = vmatprep.subr.bf16.mxu0 0
    %848 = vmatpush1.bf16.msra.mxu0 %v752
    %849 = vmatprep.mubr.bf16.mxu0 %v486
    %850 = vmatmul.mubr.bf16.gmra.mrb[0].mxu0 %v485
    %v851 = vpop.f32.mrb[0].mxu0
    %v852 = vadd.f32 %v575, %v851
    %v853 = vpop.f32.mrb[0].mxu0
    %v854 = vpop.f32.mrb[0].mxu0
    %v855 = vadd.f32 %v575, %v854
    %v856 = vpop.f32.mrb[0].mxu0
    %857 = vdwg.mxu0
    %858 = vmatprep.subr.bf16.mxu0 0
    %859 = vmatpush1.bf16.msra.mxu0 %v753
    %860 = vmatprep.subr.bf16.mxu0 0
    %861 = vmatpush1.bf16.msra.mxu0 %v754
    %862 = vmatprep.subr.bf16.mxu0 0
    %863 = vmatpush1.bf16.msra.mxu0 %v755
    %864 = vmatprep.subr.bf16.mxu0 0
    %865 = vmatpush1.bf16.msra.mxu0 %v756
    %866 = vmatprep.subr.bf16.mxu0 0
    %867 = vmatpush1.bf16.msra.mxu0 %v757
    %868 = vmatprep.subr.bf16.mxu0 0
    %869 = vmatpush1.bf16.msra.mxu0 %v758
    %870 = vmatprep.subr.bf16.mxu0 0
    %871 = vmatpush1.bf16.msra.mxu0 %v759
    %872 = vmatprep.subr.bf16.mxu0 0
    %873 = vmatpush1.bf16.msra.mxu0 %v760
    %874 = vmatprep.subr.bf16.mxu0 0
    %875 = vmatpush1.bf16.msra.mxu0 %v761
    %876 = vmatprep.subr.bf16.mxu0 0
    %877 = vmatpush1.bf16.msra.mxu0 %v762
    %878 = vmatprep.subr.bf16.mxu0 0
    %879 = vmatpush1.bf16.msra.mxu0 %v763
    %880 = vmatprep.subr.bf16.mxu0 0
    %881 = vmatpush1.bf16.msra.mxu0 %v764
    %882 = vmatprep.subr.bf16.mxu0 0
    %883 = vmatpush1.bf16.msra.mxu0 %v765
    %884 = vmatprep.subr.bf16.mxu0 0
    %885 = vmatpush1.bf16.msra.mxu0 %v766
    %886 = vmatprep.subr.bf16.mxu0 0
    %887 = vmatpush1.bf16.msra.mxu0 %v767
    %888 = vmatprep.subr.bf16.mxu0 0
    %889 = vmatpush1.bf16.msra.mxu0 %v768
    %890 = vmatprep.mubr.bf16.mxu0 %v488
    %891 = vmatmul.mubr.bf16.gmra.mrb[0].mxu0 %v487
    %v892 = vpop.f32.mrb[0].mxu0
    %v893 = vadd.f32 %v852, %v892
    %v894 = vpop.f32.mrb[0].mxu0
    %v895 = vpop.f32.mrb[0].mxu0
    %v896 = vadd.f32 %v855, %v895
    %v897 = vpop.f32.mrb[0].mxu0
    %898 = vdwg.mxu0
    %899 = vmatprep.subr.bf16.mxu0 0
    %900 = vmatpush1.bf16.msra.mxu0 %v769
    %901 = vmatprep.subr.bf16.mxu0 0
    %902 = vmatpush1.bf16.msra.mxu0 %v770
    %903 = vmatprep.subr.bf16.mxu0 0
    %904 = vmatpush1.bf16.msra.mxu0 %v771
    %905 = vmatprep.subr.bf16.mxu0 0
    %906 = vmatpush1.bf16.msra.mxu0 %v772
    %907 = vmatprep.subr.bf16.mxu0 0
    %908 = vmatpush1.bf16.msra.mxu0 %v773
    %909 = vmatprep.subr.bf16.mxu0 0
    %910 = vmatpush1.bf16.msra.mxu0 %v774
    %911 = vmatprep.subr.bf16.mxu0 0
    %912 = vmatpush1.bf16.msra.mxu0 %v775
    %913 = vmatprep.subr.bf16.mxu0 0
    %914 = vmatpush1.bf16.msra.mxu0 %v776
    %915 = vmatprep.subr.bf16.mxu0 0
    %916 = vmatpush1.bf16.msra.mxu0 0
    %917 = vmatprep.subr.bf16.mxu0 0
    %918 = vmatpush1.bf16.msra.mxu0 0
    %919 = vmatprep.subr.bf16.mxu0 0
    %920 = vmatpush1.bf16.msra.mxu0 0
    %921 = vmatprep.subr.bf16.mxu0 0
    %922 = vmatpush1.bf16.msra.mxu0 0
    %923 = vmatprep.subr.bf16.mxu0 0
    %924 = vmatpush1.bf16.msra.mxu0 0
    %925 = vmatprep.subr.bf16.mxu0 0
    %926 = vmatpush1.bf16.msra.mxu0 0
    %927 = vmatprep.subr.bf16.mxu0 0
    %928 = vmatpush1.bf16.msra.mxu0 0
    %929 = vmatprep.subr.bf16.mxu0 0
    %930 = vmatpush1.bf16.msra.mxu0 0
    %931 = vmatprep.mubr.bf16.mxu0 0
    %932 = vmatmul.mubr.bf16.gmra.mrb[0].mxu0 %v489
    %v933 = vpop.f32.mrb[0].mxu0
    %v934 = vadd.f32 %v893, %v933
    %v935 = vpop.f32.mrb[0].mxu0
    %v936 = vpop.f32.mrb[0].mxu0
    %v937 = vadd.f32 %v896, %v936
    %v938 = vpop.f32.mrb[0].mxu0
    %939 = vdwg.mxu0
    %v940 = vmax.f32 %v934, 0.0
    %v941 = vmax.f32 %v937, 0.0
    %942 = vst [vmem:[#allocation10] sm:$0xff] %v940
    %943 = vst [vmem:[#allocation10 + $0x8] sm:$0xff] %v941
    %v944 = vadd.f32 %v940, %v941
    %v945 = vrot.slane %v944, 4
    %v946 = vadd.f32 %v944, %v945
    %v947 = vrot.slane %v946, 2
    %v948 = vadd.f32 %v946, %v947
    %v949 = vrot.slane %v948, 1
    %v950 = vadd.f32 %v948, %v949
    %v951 = vrcp.pop 16.0
    %v952 = vmul.f32 %v950, %v951
    %953 = vst [vmem:[#allocation11] sm:$0x1] %v952
    %v954 = vpack.c.bf16 %v952, %v952
    %v955 = vld [vmem:[#allocation8] sm:$0xf]
    %v956 = vld [vmem:[#allocation8 + $0x4] sm:$0xf]
    %v957 = vld [vmem:[#allocation8 + $0x8] sm:$0xf]
    %v958 = vld [vmem:[#allocation8 + $0xc] sm:$0xf]
    %v959 = vld [vmem:[#allocation8 + $0x10] sm:$0xf]
    %v960 = vld [vmem:[#allocation8 + $0x14] sm:$0xf]
    %v961 = vld [vmem:[#allocation8 + $0x18] sm:$0xf]
    %v962 = vld [vmem:[#allocation8 + $0x1c] sm:$0xf]
    %v963 = vld [vmem:[#allocation8 + $0x20] sm:$0xf]
    %v964 = vld [vmem:[#allocation8 + $0x24] sm:$0xf]
    %v965 = vld [vmem:[#allocation8 + $0x28] sm:$0xf]
    %v966 = vld [vmem:[#allocation8 + $0x2c] sm:$0xf]
    %v967 = vld [vmem:[#allocation8 + $0x30] sm:$0xf]
    %v968 = vld [vmem:[#allocation8 + $0x34] sm:$0xf]
    %v969 = vld [vmem:[#allocation8 + $0x38] sm:$0xf]
    %v970 = vld [vmem:[#allocation8 + $0x3c] sm:$0xf]
    %v971 = vld [vmem:[%s6] sm:$0x1]
    %v988 = vunpack.c.l.b16 %v955
    %v989 = vunpack.c.l.b16 %v956
    %v990 = vunpack.c.l.b16 %v957
    %v991 = vunpack.c.l.b16 %v958
    %v992 = vunpack.c.l.b16 %v959
    %v993 = vunpack.c.l.b16 %v960
    %v994 = vunpack.c.l.b16 %v961
    %v995 = vunpack.c.l.b16 %v962
    %v996 = vunpack.c.l.b16 %v963
    %v997 = vunpack.c.l.b16 %v964
    %v998 = vunpack.c.l.b16 %v965
    %v999 = vunpack.c.l.b16 %v966
    %v1000 = vunpack.c.l.b16 %v967
    %v1001 = vunpack.c.l.b16 %v968
    %v1002 = vunpack.c.l.b16 %v969
    %v1003 = vunpack.c.l.b16 %v970
    %v1004 = vpack.c.b16 %v989, %v988
    %v1005 = vpack.c.b16 %v991, %v990
    %v1006 = vpack.c.b16 %v993, %v992
    %v1007 = vpack.c.b16 %v995, %v994
    %v1008 = vpack.c.b16 %v997, %v996
    %v1009 = vpack.c.b16 %v999, %v998
    %v1010 = vpack.c.b16 %v1001, %v1000
    %v1011 = vpack.c.b16 %v1003, %v1002
    %1020 = vmatprep.subr.bf16.mxu0 0
    %1021 = vmatpush1.bf16.msra.mxu0 %v1004
    %1022 = vmatprep.subr.bf16.mxu0 0
    %1023 = vmatpush1.bf16.msra.mxu0 %v1005
    %1024 = vmatprep.subr.bf16.mxu0 0
    %1025 = vmatpush1.bf16.msra.mxu0 %v1006
    %1026 = vmatprep.subr.bf16.mxu0 0
    %1027 = vmatpush1.bf16.msra.mxu0 %v1007
    %1028 = vmatprep.subr.bf16.mxu0 0
    %1029 = vmatpush1.bf16.msra.mxu0 %v1008
    %1030 = vmatprep.subr.bf16.mxu0 0
    %1031 = vmatpush1.bf16.msra.mxu0 %v1009
    %1032 = vmatprep.subr.bf16.mxu0 0
    %1033 = vmatpush1.bf16.msra.mxu0 %v1010
    %1034 = vmatprep.subr.bf16.mxu0 0
    %1035 = vmatpush1.bf16.msra.mxu0 %v1011
    %1036 = vmatprep.subr.bf16.mxu0 0
    %1037 = vmatpush1.bf16.msra.mxu0 0
    %1038 = vmatprep.subr.bf16.mxu0 0
    %1039 = vmatpush1.bf16.msra.mxu0 0
    %1040 = vmatprep.subr.bf16.mxu0 0
    %1041 = vmatpush1.bf16.msra.mxu0 0
    %1042 = vmatprep.subr.bf16.mxu0 0
    %1043 = vmatpush1.bf16.msra.mxu0 0
    %1044 = vmatprep.subr.bf16.mxu0 0
    %1045 = vmatpush1.bf16.msra.mxu0 0
    %1046 = vmatprep.subr.bf16.mxu0 0
    %1047 = vmatpush1.bf16.msra.mxu0 0
    %1048 = vmatprep.subr.bf16.mxu0 0
    %1049 = vmatpush1.bf16.msra.mxu0 0
    %1050 = vmatprep.subr.bf16.mxu0 0
    %1051 = vmatpush1.bf16.msra.mxu0 0
    %1052 = vmatprep.mubr.bf16.mxu0 0
    %1053 = vmatmul.mubr.bf16.gmra.mrb[0].mxu0 %v954
    %v1054 = vpop.f32.mrb[0].mxu0
    %v1055 = vadd.f32 %v971, %v1054
    %v1056 = vpop.f32.mrb[0].mxu0
    %v1057 = vpop.f32.mrb[0].mxu0
    %v1058 = vpop.f32.mrb[0].mxu0
    %1059 = vdwg.mxu0
    %1060 = vst [vmem:[#allocation13] sm:$0x1] %v1055
    // Predicated region
    $region46: #{tpu_custom_call.1} parent=1 // pred_check
      _
    $region47: #{tpu_custom_call.1} parent=1 // pred_check_branch
      %1062 = sbr.rel (0) target = $region49
    $region48: #{tpu_custom_call.1} parent=1 // pred_region
      %s1064 = ssub.s32 256, 256
      %1065 = vsyncadd [#allocation4], %s1064
      %s1066 = sshll.u32 [#allocation10], 4
      %s1067 = int_to_ptr.vmem [resolvable:$true] %s1066
      %1072 = dma.vmem_to_hbm [thread:$0]  %s1067, 256, %s7, [#allocation4], 128, 128, 8
    $region49: #{tpu_custom_call.1} parent=1 // pred_fallthru
      _
    // Predicated region
    $region50: #{tpu_custom_call.1} parent=1 // pred_check
      _
    $region51: #{tpu_custom_call.1} parent=1 // pred_check_branch
      %1074 = sbr.rel (0) target = $region53
    $region52: #{tpu_custom_call.1} parent=1 // pred_region
      %s1076 = ssub.s32 16, 16
      %1077 = vsyncadd [#allocation12], %s1076
      %s1079 = sshll.u32 [#allocation11], 4
      %s1080 = int_to_ptr.vmem [resolvable:$true] %s1079
      %1082 = dma.vmem_to_hbm [thread:$0]  %s1080, 16, %s8, [#allocation12]
    $region53: #{tpu_custom_call.1} parent=1 // pred_fallthru
      _
    // Predicated region
    $region54: #{tpu_custom_call.1} parent=1 // pred_check
      _
    $region55: #{tpu_custom_call.1} parent=1 // pred_check_branch
      %1084 = sbr.rel (0) target = $region57
    $region56: #{tpu_custom_call.1} parent=1 // pred_region
      %s1086 = ssub.s32 16, 16
      %1087 = vsyncadd [#allocation12], %s1086
      %s1089 = sshll.u32 [#allocation13], 4
      %s1090 = int_to_ptr.vmem [resolvable:$true] %s1089
      %1092 = dma.vmem_to_hbm [thread:$0]  %s1090, 16, %s9, [#allocation12]
    $region57: #{tpu_custom_call.1} parent=1 // pred_fallthru
      _
    // Predicated region
    $region58: #{tpu_custom_call.1} parent=1 // pred_check
      _
    $region59: #{tpu_custom_call.1} parent=1 // pred_check_branch
      %1094 = sbr.rel (0) target = $region61
    $region60: #{tpu_custom_call.1} parent=1 // pred_region
      %1095 = dma.done [#allocation4], 256
    $region61: #{tpu_custom_call.1} parent=1 // pred_fallthru
      _
    // Predicated region
    $region62: #{tpu_custom_call.1} parent=1 // pred_check
      _
    $region63: #{tpu_custom_call.1} parent=1 // pred_check_branch
      %1097 = sbr.rel (0) target = $region65
    $region64: #{tpu_custom_call.1} parent=1 // pred_region
      %1098 = dma.done [#allocation12], 16
    $region65: #{tpu_custom_call.1} parent=1 // pred_fallthru
      _
    // Predicated region
    $region66: #{tpu_custom_call.1} parent=1 // pred_check
      _
    $region67: #{tpu_custom_call.1} parent=1 // pred_check_branch
      %1100 = sbr.rel (0) target = $region69
    $region68: #{tpu_custom_call.1} parent=1 // pred_region
      %1101 = dma.done [#allocation12], 16
    $region69: #{tpu_custom_call.1} parent=1 // pred_fallthru
      _
    %1102 = vsyncpa [#allocation3], 1
    %1103 = vsyncpa [#allocation6], 1
    %1104 = vsyncpa [#allocation9], 1
    %1105 = vsyncpa [#allocation4], 1
    %1106 = vsyncpa [#allocation12], 1

</llo_original>
